<compile_context>
chip_gen: v7x
topology: tpu7x:2x2x1
jax: 0.10.0
libtpu: 0.0.40
codegen_flags: <defaults>
</compile_context>

<pallas_src>
import jax
import jax.numpy as jnp
import numpy as np
from jax.experimental import pallas as pl
from jax.experimental.pallas import tpu as pltpu


def _bilinear_matrix(in_size: int, out_size: int) -> np.ndarray:
    """Interpolation matrix M (out_size, in_size) matching torch bilinear,
    align_corners=False:  y = M @ x  resizes one axis from in_size to out_size."""
    scale = in_size / out_size
    dst = np.arange(out_size, dtype=np.float64)
    src = (dst + 0.5) * scale - 0.5
    src = np.clip(src, 0.0, in_size - 1)           # torch clamps lower bound to 0
    i0 = np.floor(src).astype(np.int64)
    i0 = np.clip(i0, 0, in_size - 1)
    i1 = np.minimum(i0 + 1, in_size - 1)
    w1 = src - i0
    w0 = 1.0 - w1
    M = np.zeros((out_size, in_size), dtype=np.float32)
    M[np.arange(out_size), i0] += w0.astype(np.float32)
    M[np.arange(out_size), i1] += w1.astype(np.float32)
    return M


def _make_col_matrix(W: int, C: int, out_size: int) -> np.ndarray:
    """Combined per-channel column-interpolation matrix, shape (W*C, C*out_size).

    B_c[w*C + c, c*out_size + o] = B[o, w]  so that
    (row-resized HWC flat) @ B_c performs the W->out_size resize independently
    per channel and lays the result out as a lane-dense (OUT, C*OUT) slab.
    Each column of B_c sums to 1 (needed for the folded '-1' constant)."""
    B = _bilinear_matrix(W, out_size)               # (OUT, W), rows sum to 1
    Bc = np.zeros((W * C, C * out_size), dtype=np.float32)
    for c in range(C):
        Bc[c::C, c * out_size:(c + 1) * out_size] = B.T
    return Bc


def _input_layer_kernel(img_ref, a_ref, bc_ref, out_ref):
    # img_ref: (H, W*C) uint8 (native HWC data, flattened view)
    # a_ref:   (OUT, H) f32, already scaled by 2/255
    # bc_ref:  (W*C, C*OUT) f32 combined column matrix
    # out_ref: (OUT, C*OUT) f32
    x = img_ref[...].astype(jnp.float32)                                   # u8 -> f32 in VMEM
    t = jnp.dot(a_ref[...], x, preferred_element_type=jnp.float32)         # (OUT, W*C)
    out_ref[...] = jnp.dot(t, bc_ref[...],
                           preferred_element_type=jnp.float32) - 1.0       # (OUT, C*OUT)


def input_layer(image: jax.Array, image_size: int) -> jax.Array:
    """image: (H, W, C) uint8 (or any dtype) HWC image, as the PyTorch module expects.
    Returns: (C, image_size, image_size) float32 (CHW), matching InputLayer.forward."""
    H, W, C = image.shape
    img_flat = image.reshape(H, W * C)              # zero-copy view of the HWC data

    A = jnp.asarray(_bilinear_matrix(H, image_size) * np.float32(2.0 / 255.0))  # (OUT, H)
    Bc = jnp.asarray(_make_col_matrix(W, C, image_size))                        # (W*C, C*OUT)

    out_flat = pl.pallas_call(
        _input_layer_kernel,
        out_shape=jax.ShapeDtypeStruct((image_size, C * image_size), jnp.float32),
        grid=(1,),                                   # single program: no per-channel grid overhead
        in_specs=[
            pl.BlockSpec((H, W * C), lambda i: (0, 0)),
            pl.BlockSpec((image_size, H), lambda i: (0, 0)),
            pl.BlockSpec((W * C, C * image_size), lambda i: (0, 0)),
        ],
        out_specs=pl.BlockSpec((image_size, C * image_size), lambda i: (0, 0)),
        compiler_params=pltpu.CompilerParams(dimension_semantics=("arbitrary",)),
    )(img_flat, A, Bc)

    # TODO(synk): for large production frames (e.g. 1080x1920 on v7x's 64 MiB VMEM),
    # tile output rows (grid over OUT//tm with a row-band input index_map, plus
    # vmem_limit_bytes) and/or replace the dense A/Bc with 2-tap gathers.

    # Small-output glue: (OUT, C*OUT) -> (OUT, C, OUT) -> (C, OUT, OUT)
    return out_flat.reshape(image_size, C, image_size).transpose(1, 0, 2)


def _reference(image: jax.Array, image_size: int) -> jax.Array:
    """Pure-JAX reference mirroring the PyTorch math exactly (unfolded)."""
    H, W, C = image.shape
    x = jnp.transpose(image, (2, 0, 1)).astype(jnp.float32)
    x = 2.0 * (x / 255.0) - 1.0
    A = jnp.asarray(_bilinear_matrix(H, image_size))        # (OUT, H)
    B = jnp.asarray(_bilinear_matrix(W, image_size))        # (OUT, W)
    return jnp.einsum("oh,chw,pw->cop", A, x, B)


if __name__ == "__main__":
    key = jax.random.PRNGKey(0)
    H, W, C = 16, 16, 3
    IMAGE_SIZE = 32   # cfg.INPUT.IMAGE_SIZE

    # deterministic synthetic uint8-style image (HWC), like a decoded frame
    image = jax.random.randint(key, (H, W, C), 0, 256, dtype=jnp.int32).astype(jnp.uint8)

    out = jax.block_until_ready(input_layer(image, IMAGE_SIZE))
    ref = jax.block_until_ready(_reference(image, IMAGE_SIZE))

    assert out.shape == (C, IMAGE_SIZE, IMAGE_SIZE)
    assert out.dtype == jnp.float32
    # folding 2/255 into A changes rounding order slightly; still f32-accurate
    np.testing.assert_allclose(np.asarray(out), np.asarray(ref), rtol=1e-4, atol=1e-4)

    print("KERNEL_OK")
</pallas_src>

<mosaic_0001>
module attributes {stable_mosaic.version = 11 : i64} {
  func.func @_input_layer_kernel(%arg0: i32, %arg1: memref<16x48xi8, #tpu.memory_space<vmem>>, %arg2: memref<32x16xf32, #tpu.memory_space<vmem>>, %arg3: memref<48x96xf32, #tpu.memory_space<vmem>>, %arg4: memref<32x96xf32, #tpu.memory_space<vmem>>) attributes {dimension_semantics = [#tpu.dimension_semantics<arbitrary>], iteration_bounds = array<i64: 1>, scalar_prefetch = 0 : i64, scratch_operands = 0 : i64, tpu.core_type = #tpu.core_type<tc>, window_params = [{pipeline_mode = #tpu.pipeline_mode<synchronous>, transform_indices = @transform_0, window_bounds = array<i64: 16, 48>}, {pipeline_mode = #tpu.pipeline_mode<synchronous>, transform_indices = @transform_1, window_bounds = array<i64: 32, 16>}, {pipeline_mode = #tpu.pipeline_mode<synchronous>, transform_indices = @transform_2, window_bounds = array<i64: 48, 96>}, {pipeline_mode = #tpu.pipeline_mode<synchronous>, transform_indices = @transform_3, window_bounds = array<i64: 32, 96>}]} {
    %c0 = arith.constant 0 : index
    %c0_0 = arith.constant 0 : index
    %0 = vector.load %arg1[%c0, %c0_0] : memref<16x48xi8, #tpu.memory_space<vmem>>, vector<16x48xi8>
    %1 = arith.uitofp %0 : vector<16x48xi8> to vector<16x48xf32>
    %c0_1 = arith.constant 0 : index
    %c0_2 = arith.constant 0 : index
    %2 = vector.load %arg2[%c0_1, %c0_2] : memref<32x16xf32, #tpu.memory_space<vmem>>, vector<32x16xf32>
    %cst = arith.constant dense<0.000000e+00> : vector<32x48xf32>
    %3 = tpu.matmul %2, %1, %cst {dimension_numbers = #tpu.dot_dimension_numbers<[1], [0], [0], [1], [0, 0, 1, 1], [], []>} : vector<32x16xf32>, vector<16x48xf32>, vector<32x48xf32> -> vector<32x48xf32>
    %c0_3 = arith.constant 0 : index
    %c0_4 = arith.constant 0 : index
    %4 = vector.load %arg3[%c0_3, %c0_4] : memref<48x96xf32, #tpu.memory_space<vmem>>, vector<48x96xf32>
    %cst_5 = arith.constant dense<0.000000e+00> : vector<32x96xf32>
    %5 = tpu.matmul %3, %4, %cst_5 {dimension_numbers = #tpu.dot_dimension_numbers<[1], [0], [0], [1], [0, 0, 1, 1], [], []>} : vector<32x48xf32>, vector<48x96xf32>, vector<32x96xf32> -> vector<32x96xf32>
    %cst_6 = arith.constant 1.000000e+00 : f32
    %6 = vector.broadcast %cst_6 : f32 to vector<32x96xf32>
    %7 = arith.subf %5, %6 : vector<32x96xf32>
    %c0_7 = arith.constant 0 : index
    %c0_8 = arith.constant 0 : index
    %8 = vector.load %arg4[%c0_7, %c0_8] : memref<32x96xf32, #tpu.memory_space<vmem>>, vector<32x96xf32>
    tpu.vector_store %arg4[%c0_7, %c0_8], %7 {strides = array<i32>} : memref<32x96xf32, #tpu.memory_space<vmem>>, vector<32x96xf32>,
    return
  }
  func.func @transform_0(%arg0: i32) -> (i32, i32) {
    %c0_i32 = arith.constant 0 : i32
    %c0_i32_0 = arith.constant 0 : i32
    %c0_i32_1 = arith.constant 0 : i32
    return %c0_i32, %c0_i32_0 : i32, i32
  }
  func.func @transform_1(%arg0: i32) -> (i32, i32) {
    %c0_i32 = arith.constant 0 : i32
    %c0_i32_0 = arith.constant 0 : i32
    %c0_i32_1 = arith.constant 0 : i32
    return %c0_i32, %c0_i32_0 : i32, i32
  }
  func.func @transform_2(%arg0: i32) -> (i32, i32) {
    %c0_i32 = arith.constant 0 : i32
    %c0_i32_0 = arith.constant 0 : i32
    %c0_i32_1 = arith.constant 0 : i32
    return %c0_i32, %c0_i32_0 : i32, i32
  }
  func.func @transform_3(%arg0: i32) -> (i32, i32) {
    %c0_i32 = arith.constant 0 : i32
    %c0_i32_0 = arith.constant 0 : i32
    %c0_i32_1 = arith.constant 0 : i32
    return %c0_i32, %c0_i32_0 : i32, i32
  }
}

</mosaic_0001>

<llo_original>
// kernel: tpu_custom_call.1
$region0: #{tpu_custom_call.1}
  #allocation0 [shape = 'u32[]', space=smem, size = 0x4, offset = 0x4, fixed_abs, tag = 'smem constant byte address 0x4 - core index']
  #allocation1 [shape = 'u32[144,128]{1,0:T(1,128)}', space=vmem, size = 0x12000, scoped, tag = 'internal scratch']
  %s0 = inlined_call_operand.vmem [shape: u8[16,48], index: 0, kind: input, shape index: {}]
  %s1 = inlined_call_operand.vmem [shape: f32[32,16], index: 1, kind: input, shape index: {}]
  %s2 = inlined_call_operand.vmem [shape: f32[48,96], index: 2, kind: input, shape index: {}]
  %s3 = inlined_call_operand.hbm [shape: f32[32,96], index: 3, kind: output, shape index: {}]
  %s4 = sld [smem:[#allocation0]]
  $region22: #{tpu_custom_call.1} parent=0
    _
  %s6 = ssub.s32 1, %s4
  %s7 = scalar_select 0, %s6, %s4
  $region1: #{tpu_custom_call.1} parent=0
    #allocation2 [shape = 'u8[16384]{0}', space=vmem, size = 0x4000, scoped, tag = 'output window, operand 0, single buffered']
    #allocation3 [shape = 's32[1]{0}', space=sflag, size = 0x4, scoped, tag = 'scoped memory for tpu_custom_call.1']
    %8 = vsyncpa [#allocation3], 0
    // Predicated region
    $region2: #{tpu_custom_call.1} parent=1 // pred_check
      _
    $region3: #{tpu_custom_call.1} parent=1 // pred_check_branch
      %10 = sbr.rel (0) target = $region5
    $region4: #{tpu_custom_call.1} parent=1 // pred_region
      _
    $region5: #{tpu_custom_call.1} parent=1 // pred_fallthru
      _
    // Predicated region
    $region6: #{tpu_custom_call.1} parent=1 // pred_check
      _
    $region7: #{tpu_custom_call.1} parent=1 // pred_check_branch
      %12 = sbr.rel (0) target = $region9
    $region8: #{tpu_custom_call.1} parent=1 // pred_region
      _
    $region9: #{tpu_custom_call.1} parent=1 // pred_fallthru
      _
    // Predicated region
    $region10: #{tpu_custom_call.1} parent=1 // pred_check
      _
    $region11: #{tpu_custom_call.1} parent=1 // pred_check_branch
      %14 = sbr.rel (0) target = $region13
    $region12: #{tpu_custom_call.1} parent=1 // pred_region
      _
    $region13: #{tpu_custom_call.1} parent=1 // pred_fallthru
      _
    %v15 = vld [vmem:[%s0] sm:$0x3]
    %v16 = vld [vmem:[%s0 + $0x2] sm:$0x3]
    %v17 = vunpack.c.0.s8 %v15
    %v18 = vunpack.c.0.s8 %v16
    %v19 = vand.u32 %v17, 255
    %v20 = vand.u32 %v18, 255
    %v21 = vcvt.s32.f32 %v19
    %v22 = vcvt.s32.f32 %v20
    %v23 = vld [vmem:[%s1] sm:$0xff]
    %v24 = vld [vmem:[%s1 + $0x8] sm:$0xff]
    %v25 = vld [vmem:[%s1 + $0x10] sm:$0xff]
    %v26 = vld [vmem:[%s1 + $0x18] sm:$0xff]
    %vm27 = vcmask 130048
    %v29 = vsel %vm27, %v23, 0
    %v32 = vsel %vm27, %v24, 0
    %v35 = vsel %vm27, %v25, 0
    %v38 = vsel %vm27, %v26, 0
    %40 = vmatprep.subr.mxu0 0.0
    %41 = vmatpush1.msra.mxu0 %v21
    %42 = vmatprep.subr.mxu0 0.0
    %43 = vmatpush1.msra.mxu0 %v22
    %44 = vmatprep.subr.mxu0 0.0
    %45 = vmatpush1.msra.mxu0 0.0
    %46 = vmatprep.subr.mxu0 0.0
    %47 = vmatpush1.msra.mxu0 0.0
    %48 = vmatprep.subr.mxu0 0.0
    %49 = vmatpush1.msra.mxu0 0.0
    %50 = vmatprep.subr.mxu0 0.0
    %51 = vmatpush1.msra.mxu0 0.0
    %52 = vmatprep.subr.mxu0 0.0
    %53 = vmatpush1.msra.mxu0 0.0
    %54 = vmatprep.subr.mxu0 0.0
    %55 = vmatpush1.msra.mxu0 0.0
    %56 = vmatprep.subr.mxu0 0.0
    %57 = vmatpush1.msra.mxu0 0.0
    %58 = vmatprep.subr.mxu0 0.0
    %59 = vmatpush1.msra.mxu0 0.0
    %60 = vmatprep.subr.mxu0 0.0
    %61 = vmatpush1.msra.mxu0 0.0
    %62 = vmatprep.subr.mxu0 0.0
    %63 = vmatpush1.msra.mxu0 0.0
    %64 = vmatprep.subr.mxu0 0.0
    %65 = vmatpush1.msra.mxu0 0.0
    %66 = vmatprep.subr.mxu0 0.0
    %67 = vmatpush1.msra.mxu0 0.0
    %68 = vmatprep.subr.mxu0 0.0
    %69 = vmatpush1.msra.mxu0 0.0
    %70 = vmatprep.subr.mxu0 0.0
    %71 = vmatpush1.msra.mxu0 0.0
    %72 = vmatprep.subr.mxu0 0.0
    %73 = vmatpush1.msra.mxu0 0.0
    %74 = vmatprep.subr.mxu0 0.0
    %75 = vmatpush1.msra.mxu0 0.0
    %76 = vmatprep.subr.mxu0 0.0
    %77 = vmatpush1.msra.mxu0 0.0
    %78 = vmatprep.subr.mxu0 0.0
    %79 = vmatpush1.msra.mxu0 0.0
    %80 = vmatprep.subr.mxu0 0.0
    %81 = vmatpush1.msra.mxu0 0.0
    %82 = vmatprep.subr.mxu0 0.0
    %83 = vmatpush1.msra.mxu0 0.0
    %84 = vmatprep.subr.mxu0 0.0
    %85 = vmatpush1.msra.mxu0 0.0
    %86 = vmatprep.subr.mxu0 0.0
    %87 = vmatpush1.msra.mxu0 0.0
    %88 = vmatprep.subr.mxu0 0.0
    %89 = vmatpush1.msra.mxu0 0.0
    %90 = vmatprep.subr.mxu0 0.0
    %91 = vmatpush1.msra.mxu0 0.0
    %92 = vmatprep.subr.mxu0 0.0
    %93 = vmatpush1.msra.mxu0 0.0
    %94 = vmatprep.subr.mxu0 0.0
    %95 = vmatpush1.msra.mxu0 0.0
    %96 = vmatprep.subr.mxu0 0.0
    %97 = vmatpush1.msra.mxu0 0.0
    %98 = vmatprep.subr.mxu0 0.0
    %99 = vmatpush1.msra.mxu0 0.0
    %100 = vmatprep.subr.mxu0 0.0
    %101 = vmatpush1.msra.mxu0 0.0
    %102 = vmatprep.subr.mxu0 0.0
    %103 = vmatpush1.msra.mxu0 0.0
    %104 = vmatprep.mubr.f32.mxu0 0.0
    %105 = vmatmul.mubr.f32.gmra.mrb[0].mxu0 %v29
    %v106 = vpop.f32.mrb[0].mxu0
    %v107 = vadd.f32 0.0, %v106
    %v108 = vpop.f32.mrb[0].mxu0
    %109 = vmatprep.mubr.f32.mxu0 0.0
    %110 = vmatmul.mubr.f32.gmra.mrb[0].mxu0 %v32
    %v111 = vpop.f32.mrb[0].mxu0
    %v112 = vadd.f32 0.0, %v111
    %v113 = vpop.f32.mrb[0].mxu0
    %114 = vmatprep.mubr.f32.mxu0 0.0
    %115 = vmatmul.mubr.f32.gmra.mrb[0].mxu0 %v35
    %v116 = vpop.f32.mrb[0].mxu0
    %v117 = vadd.f32 0.0, %v116
    %v118 = vpop.f32.mrb[0].mxu0
    %119 = vmatprep.mubr.f32.mxu0 0.0
    %120 = vmatmul.mubr.f32.gmra.mrb[0].mxu0 %v38
    %v121 = vpop.f32.mrb[0].mxu0
    %v122 = vadd.f32 0.0, %v121
    %v123 = vpop.f32.mrb[0].mxu0
    %124 = vdwg.mxu0
    %v125 = vld [vmem:[%s2] sm:$0xff]
    %v126 = vld [vmem:[%s2 + $0x8] sm:$0xff]
    %v127 = vld [vmem:[%s2 + $0x10] sm:$0xff]
    %v128 = vld [vmem:[%s2 + $0x18] sm:$0xff]
    %v129 = vld [vmem:[%s2 + $0x20] sm:$0xff]
    %v130 = vld [vmem:[%s2 + $0x28] sm:$0xff]
    %vm131 = vcmask 392192
    %v133 = vsel %vm131, %v107, 0
    %v136 = vsel %vm131, %v112, 0
    %v139 = vsel %vm131, %v117, 0
    %v142 = vsel %vm131, %v122, 0
    %144 = vmatprep.subr.mxu0 0.0
    %145 = vmatpush1.msra.mxu0 %v125
    %146 = vmatprep.subr.mxu0 0.0
    %147 = vmatpush1.msra.mxu0 %v126
    %148 = vmatprep.subr.mxu0 0.0
    %149 = vmatpush1.msra.mxu0 %v127
    %150 = vmatprep.subr.mxu0 0.0
    %151 = vmatpush1.msra.mxu0 %v128
    %152 = vmatprep.subr.mxu0 0.0
    %153 = vmatpush1.msra.mxu0 %v129
    %154 = vmatprep.subr.mxu0 0.0
    %155 = vmatpush1.msra.mxu0 %v130
    %156 = vmatprep.subr.mxu0 0.0
    %157 = vmatpush1.msra.mxu0 0.0
    %158 = vmatprep.subr.mxu0 0.0
    %159 = vmatpush1.msra.mxu0 0.0
    %160 = vmatprep.subr.mxu0 0.0
    %161 = vmatpush1.msra.mxu0 0.0
    %162 = vmatprep.subr.mxu0 0.0
    %163 = vmatpush1.msra.mxu0 0.0
    %164 = vmatprep.subr.mxu0 0.0
    %165 = vmatpush1.msra.mxu0 0.0
    %166 = vmatprep.subr.mxu0 0.0
    %167 = vmatpush1.msra.mxu0 0.0
    %168 = vmatprep.subr.mxu0 0.0
    %169 = vmatpush1.msra.mxu0 0.0
    %170 = vmatprep.subr.mxu0 0.0
    %171 = vmatpush1.msra.mxu0 0.0
    %172 = vmatprep.subr.mxu0 0.0
    %173 = vmatpush1.msra.mxu0 0.0
    %174 = vmatprep.subr.mxu0 0.0
    %175 = vmatpush1.msra.mxu0 0.0
    %176 = vmatprep.subr.mxu0 0.0
    %177 = vmatpush1.msra.mxu0 0.0
    %178 = vmatprep.subr.mxu0 0.0
    %179 = vmatpush1.msra.mxu0 0.0
    %180 = vmatprep.subr.mxu0 0.0
    %181 = vmatpush1.msra.mxu0 0.0
    %182 = vmatprep.subr.mxu0 0.0
    %183 = vmatpush1.msra.mxu0 0.0
    %184 = vmatprep.subr.mxu0 0.0
    %185 = vmatpush1.msra.mxu0 0.0
    %186 = vmatprep.subr.mxu0 0.0
    %187 = vmatpush1.msra.mxu0 0.0
    %188 = vmatprep.subr.mxu0 0.0
    %189 = vmatpush1.msra.mxu0 0.0
    %190 = vmatprep.subr.mxu0 0.0
    %191 = vmatpush1.msra.mxu0 0.0
    %192 = vmatprep.subr.mxu0 0.0
    %193 = vmatpush1.msra.mxu0 0.0
    %194 = vmatprep.subr.mxu0 0.0
    %195 = vmatpush1.msra.mxu0 0.0
    %196 = vmatprep.subr.mxu0 0.0
    %197 = vmatpush1.msra.mxu0 0.0
    %198 = vmatprep.subr.mxu0 0.0
    %199 = vmatpush1.msra.mxu0 0.0
    %200 = vmatprep.subr.mxu0 0.0
    %201 = vmatpush1.msra.mxu0 0.0
    %202 = vmatprep.subr.mxu0 0.0
    %203 = vmatpush1.msra.mxu0 0.0
    %204 = vmatprep.subr.mxu0 0.0
    %205 = vmatpush1.msra.mxu0 0.0
    %206 = vmatprep.subr.mxu0 0.0
    %207 = vmatpush1.msra.mxu0 0.0
    %208 = vmatprep.mubr.f32.mxu0 0.0
    %209 = vmatmul.mubr.f32.gmra.mrb[0].mxu0 %v133
    %v210 = vpop.f32.mrb[0].mxu0
    %v211 = vadd.f32 0.0, %v210
    %v212 = vpop.f32.mrb[0].mxu0
    %213 = vmatprep.mubr.f32.mxu0 0.0
    %214 = vmatmul.mubr.f32.gmra.mrb[0].mxu0 %v136
    %v215 = vpop.f32.mrb[0].mxu0
    %v216 = vadd.f32 0.0, %v215
    %v217 = vpop.f32.mrb[0].mxu0
    %218 = vmatprep.mubr.f32.mxu0 0.0
    %219 = vmatmul.mubr.f32.gmra.mrb[0].mxu0 %v139
    %v220 = vpop.f32.mrb[0].mxu0
    %v221 = vadd.f32 0.0, %v220
    %v222 = vpop.f32.mrb[0].mxu0
    %223 = vmatprep.mubr.f32.mxu0 0.0
    %224 = vmatmul.mubr.f32.gmra.mrb[0].mxu0 %v142
    %v225 = vpop.f32.mrb[0].mxu0
    %v226 = vadd.f32 0.0, %v225
    %v227 = vpop.f32.mrb[0].mxu0
    %228 = vdwg.mxu0
    %v229 = vsub.f32 %v211, 1.0
    %v230 = vsub.f32 %v216, 1.0
    %v231 = vsub.f32 %v221, 1.0
    %v232 = vsub.f32 %v226, 1.0
    %vm233 = vcmask 785408
    %234 = vst.msk [vmem:[#allocation2] sm:$0xff] %vm233, %v229
    %235 = vst.msk [vmem:[#allocation2 + $0x8] sm:$0xff] %vm233, %v230
    %236 = vst.msk [vmem:[#allocation2 + $0x10] sm:$0xff] %vm233, %v231
    %237 = vst.msk [vmem:[#allocation2 + $0x18] sm:$0xff] %vm233, %v232
    // Predicated region
    $region14: #{tpu_custom_call.1} parent=1 // pred_check
      _
    $region15: #{tpu_custom_call.1} parent=1 // pred_check_branch
      %239 = sbr.rel (0) target = $region17
    $region16: #{tpu_custom_call.1} parent=1 // pred_region
      %s241 = ssub.s32 512, 512
      %242 = vsyncadd [#allocation3], %s241
      %s243 = sshll.u32 [#allocation2], 4
      %s244 = int_to_ptr.vmem [resolvable:$true] %s243
      %249 = dma.vmem_to_hbm [thread:$0]  %s244, 512, %s3, [#allocation3], 128, 128, 8
    $region17: #{tpu_custom_call.1} parent=1 // pred_fallthru
      _
    // Predicated region
    $region18: #{tpu_custom_call.1} parent=1 // pred_check
      _
    $region19: #{tpu_custom_call.1} parent=1 // pred_check_branch
      %251 = sbr.rel (0) target = $region21
    $region20: #{tpu_custom_call.1} parent=1 // pred_region
      %252 = dma.done [#allocation3], 512
    $region21: #{tpu_custom_call.1} parent=1 // pred_fallthru
      _
    %253 = vsyncpa [#allocation3], 1

</llo_original>
